<compile_context>
chip_gen: v7x
topology: tpu7x:2x2x1
jax: 0.10.0
libtpu: 0.0.40
codegen_flags: <defaults>
</compile_context>

<pallas_src>
import jax
import jax.numpy as jnp
from jax.experimental import pallas as pl
from jax.experimental.pallas import tpu as pltpu


def mlp_kernel(x_ref, w1_ref, b1_ref, w2_ref, b2_ref,
               w3_ref, b3_ref, w4_ref, b4_ref, o_ref):
    # Whole forward pass for one batch tile; all operands resident in VMEM.
    # x arrives as f32 straight from HBM; cast to bf16 only for the MXU feed.
    x_bf = x_ref[...].astype(jnp.bfloat16)

    h = jnp.dot(x_bf, w1_ref[...],
                preferred_element_type=jnp.float32) + b1_ref[...]
    h = jnp.maximum(h, 0.0)

    h = jnp.dot(h.astype(jnp.bfloat16), w2_ref[...],
                preferred_element_type=jnp.float32) + b2_ref[...]
    h = jnp.maximum(h, 0.0)

    h = jnp.dot(h.astype(jnp.bfloat16), w3_ref[...],
                preferred_element_type=jnp.float32) + b3_ref[...]
    h = jnp.maximum(h, 0.0)

    logits = jnp.dot(h.astype(jnp.bfloat16), w4_ref[...],
                     preferred_element_type=jnp.float32) + b4_ref[...]

    # Numerically-stable log_softmax over the class axis (dim=1 in PyTorch).
    m = jnp.max(logits, axis=-1, keepdims=True)
    shifted = logits - m
    lse = jnp.log(jnp.sum(jnp.exp(shifted), axis=-1, keepdims=True))
    o_ref[...] = (shifted - lse).astype(o_ref.dtype)


def net_forward(x, params, *, tile_b=1024, min_grid_steps=4):
    """x: (B, 784) float32 -> (B, 10) float32 log-probabilities."""
    B, Din = x.shape
    (w1, b1), (w2, b2), (w3, b3), (w4, b4) = params
    h1, h2, h3 = w1.shape[1], w2.shape[1], w3.shape[1]
    Dout = w4.shape[1]

    # --- Tile selection ----------------------------------------------------
    # Multiple of 16 (sublane packing for the in-kernel bf16 view), at most the
    # requested size, and small enough that the grid keeps >= min_grid_steps
    # steps when the batch allows (v7x shards the parallel axis across 2 TCs).
    def round_up16(n):
        return ((n + 15) // 16) * 16

    tile_b = max(16, (int(tile_b) // 16) * 16)
    tile_b = min(tile_b, max(16, round_up16(pl.cdiv(B, min_grid_steps))))
    grid = (pl.cdiv(B, tile_b),)   # final block may be partial; rows independent

    # --- Operand dtypes ----------------------------------------------------
    # x stays in its native f32 HBM layout (the dominant stream); weights are
    # tiny, one-time bf16 cast, fetched once (constant index_map); biases f32.
    x = x.astype(jnp.float32)
    w1b, w2b, w3b, w4b = (w.astype(jnp.bfloat16) for w in (w1, w2, w3, w4))
    b1f, b2f, b3f, b4f = (b.astype(jnp.float32).reshape(1, -1)
                          for b in (b1, b2, b3, b4))

    # --- VMEM budget (v5e scoped default is 16 MiB, v7x physical is 64 MiB) -
    x_buf_bytes = 3 * tile_b * Din * 4                   # Buffered(3) f32 x tiles
    out_buf_bytes = 2 * tile_b * max(Dout, 128) * 4      # lane-padded out bufs
    param_bytes = 2 * sum(int(a.size) * a.dtype.itemsize
                          for a in (w1b, w2b, w3b, w4b, b1f, b2f, b3f, b4f))
    act_bytes = 6 * tile_b * max(h1, h2, h3) * 4         # in-kernel intermediates
    need = x_buf_bytes + out_buf_bytes + param_bytes + act_bytes
    vmem_limit = int(min(40 << 20, max(32 << 20, int(1.5 * need))))

    # --- Cost estimate for the XLA scheduler --------------------------------
    flops = 2 * B * (Din * h1 + h1 * h2 + h2 * h3 + h3 * Dout)
    bytes_accessed = (int(x.size) * 4
                      + 2 * sum(int(w.size) for w in (w1b, w2b, w3b, w4b))
                      + 4 * sum(int(b.size) for b in (b1f, b2f, b3f, b4f))
                      + B * Dout * 4)
    cost = pl.CostEstimate(flops=int(flops),
                           transcendentals=int(B * (Dout + 1)),
                           bytes_accessed=int(bytes_accessed))

    def build_specs(use_buffered):
        if use_buffered:
            x_spec = pl.BlockSpec((tile_b, Din), lambda i: (i, 0),
                                  pipeline_mode=pl.Buffered(3))

            def rep(a):
                return pl.BlockSpec(a.shape, lambda i: (0, 0),
                                    pipeline_mode=pl.Buffered(1))
        else:
            x_spec = pl.BlockSpec((tile_b, Din), lambda i: (i, 0))

            def rep(a):
                return pl.BlockSpec(a.shape, lambda i: (0, 0))

        in_specs = [x_spec,
                    rep(w1b), rep(b1f), rep(w2b), rep(b2f),
                    rep(w3b), rep(b3f), rep(w4b), rep(b4f)]
        # Dout=10 < 128 lanes -> masked stores, but output traffic is ~2.5% of
        # input traffic here, so lane-padding the output is not worth it.
        out_spec = pl.BlockSpec((tile_b, Dout), lambda i: (i, 0))
        return in_specs, out_spec

    def run(use_buffered):
        in_specs, out_spec = build_specs(use_buffered)
        return pl.pallas_call(
            mlp_kernel,
            out_shape=jax.ShapeDtypeStruct((B, Dout), jnp.float32),
            grid_spec=pltpu.PrefetchScalarGridSpec(
                num_scalar_prefetch=0,
                grid=grid,
                in_specs=in_specs,
                out_specs=out_spec,
            ),
            compiler_params=pltpu.CompilerParams(
                dimension_semantics=("parallel",),
                vmem_limit_bytes=vmem_limit,
            ),
            cost_estimate=cost,
        )(x, w1b, b1f, w2b, b2f, w3b, b3f, w4b, b4f)

    # Buffered(3)/Buffered(1) pipelining is the preferred path; fall back to
    # default double-buffering if this jax/Mosaic build rejects pipeline_mode.
    # (The fallback only triggers on eager calls; correctness is identical.)
    try:
        return run(True)
    except Exception:
        return run(False)


def init_params(key):
    """Deterministic init matching nn.Linear shapes (stored as (in, out))."""
    sizes = [(28 * 28, 64), (64, 64), (64, 64), (64, 10)]
    params = []
    for i, (fan_in, fan_out) in enumerate(sizes):
        kw, kb = jax.random.split(jax.random.fold_in(key, i))
        bound = 1.0 / (fan_in ** 0.5)  # PyTorch default uniform bound
        w = jax.random.uniform(kw, (fan_in, fan_out), jnp.float32, -bound, bound)
        b = jax.random.uniform(kb, (1, fan_out), jnp.float32, -bound, bound)
        params.append((w, b))
    return params


def reference_forward_f32(x, params):
    (w1, b1), (w2, b2), (w3, b3), (w4, b4) = params
    hp = jax.lax.Precision.HIGHEST
    h = jax.nn.relu(jnp.dot(x, w1, precision=hp) + b1)
    h = jax.nn.relu(jnp.dot(h, w2, precision=hp) + b2)
    h = jax.nn.relu(jnp.dot(h, w3, precision=hp) + b3)
    logits = jnp.dot(h, w4, precision=hp) + b4
    return jax.nn.log_softmax(logits, axis=1)


def reference_forward_bf16(x, params):
    # Mirrors the kernel arithmetic: bf16 operands, f32 accumulation/elementwise.
    def q(a):
        return a.astype(jnp.bfloat16).astype(jnp.float32)

    (w1, b1), (w2, b2), (w3, b3), (w4, b4) = params
    hp = jax.lax.Precision.HIGHEST
    h = jax.nn.relu(jnp.dot(q(x), q(w1), precision=hp) + b1)
    h = jax.nn.relu(jnp.dot(q(h), q(w2), precision=hp) + b2)
    h = jax.nn.relu(jnp.dot(q(h), q(w3), precision=hp) + b3)
    logits = jnp.dot(q(h), q(w4), precision=hp) + b4
    return jax.nn.log_softmax(logits, axis=1)


if __name__ == "__main__":
    key = jax.random.PRNGKey(0)
    kx, kp = jax.random.split(key)

    # Small demo: B deliberately not a tile multiple so the grid has 2 steps
    # (pipelined path) and the final block is partial (no-pad tail handling).
    B = 20
    x = jax.random.normal(kx, (B, 28 * 28), dtype=jnp.float32)
    params = init_params(kp)

    out = net_forward(x, params)
    out = jax.block_until_ready(out)
    assert out.shape == (B, 10)

    ref_q = reference_forward_bf16(x, params)
    ref_f = reference_forward_f32(x, params)
    assert jnp.allclose(out, ref_q, atol=1e-3, rtol=1e-3), "mismatch vs bf16 reference"
    assert jnp.allclose(out, ref_f, atol=5e-2), "mismatch vs f32 reference"
    # log-probabilities must exponentiate to a normalized distribution
    assert jnp.allclose(jnp.sum(jnp.exp(out), axis=1), 1.0, atol=1e-3)

    print("KERNEL_OK")
</pallas_src>

<mosaic_0001>
module attributes {stable_mosaic.version = 11 : i64} {
  func.func @mlp_kernel(%arg0: i32, %arg1: memref<16x784xf32, #tpu.memory_space<vmem>>, %arg2: memref<784x64xbf16, #tpu.memory_space<vmem>>, %arg3: memref<1x64xf32, #tpu.memory_space<vmem>>, %arg4: memref<64x64xbf16, #tpu.memory_space<vmem>>, %arg5: memref<1x64xf32, #tpu.memory_space<vmem>>, %arg6: memref<64x64xbf16, #tpu.memory_space<vmem>>, %arg7: memref<1x64xf32, #tpu.memory_space<vmem>>, %arg8: memref<64x10xbf16, #tpu.memory_space<vmem>>, %arg9: memref<1x10xf32, #tpu.memory_space<vmem>>, %arg10: memref<16x10xf32, #tpu.memory_space<vmem>>) attributes {dimension_semantics = [#tpu.dimension_semantics<parallel>], iteration_bounds = array<i64: 2>, scalar_prefetch = 0 : i64, scratch_operands = 0 : i64, tpu.core_type = #tpu.core_type<tc>, window_params = [{transform_indices = @transform_0, window_bounds = array<i64: 16, 784>}, {pipeline_mode = #tpu.pipeline_mode<synchronous>, transform_indices = @transform_1, window_bounds = array<i64: 784, 64>}, {pipeline_mode = #tpu.pipeline_mode<synchronous>, transform_indices = @transform_2, window_bounds = array<i64: 1, 64>}, {pipeline_mode = #tpu.pipeline_mode<synchronous>, transform_indices = @transform_3, window_bounds = array<i64: 64, 64>}, {pipeline_mode = #tpu.pipeline_mode<synchronous>, transform_indices = @transform_4, window_bounds = array<i64: 1, 64>}, {pipeline_mode = #tpu.pipeline_mode<synchronous>, transform_indices = @transform_5, window_bounds = array<i64: 64, 64>}, {pipeline_mode = #tpu.pipeline_mode<synchronous>, transform_indices = @transform_6, window_bounds = array<i64: 1, 64>}, {pipeline_mode = #tpu.pipeline_mode<synchronous>, transform_indices = @transform_7, window_bounds = array<i64: 64, 10>}, {pipeline_mode = #tpu.pipeline_mode<synchronous>, transform_indices = @transform_8, window_bounds = array<i64: 1, 10>}, {transform_indices = @transform_9, window_bounds = array<i64: 16, 10>}]} {
    %c0 = arith.constant 0 : index
    %c0_0 = arith.constant 0 : index
    %0 = vector.load %arg1[%c0, %c0_0] : memref<16x784xf32, #tpu.memory_space<vmem>>, vector<16x784xf32>
    %1 = arith.truncf %0 : vector<16x784xf32> to vector<16x784xbf16>
    %c0_1 = arith.constant 0 : index
    %c0_2 = arith.constant 0 : index
    %2 = vector.load %arg2[%c0_1, %c0_2] : memref<784x64xbf16, #tpu.memory_space<vmem>>, vector<784x64xbf16>
    %cst = arith.constant dense<0.000000e+00> : vector<16x64xf32>
    %3 = tpu.matmul %1, %2, %cst {dimension_numbers = #tpu.dot_dimension_numbers<[1], [0], [0], [1], [0, 0, 1, 1], [], []>} : vector<16x784xbf16>, vector<784x64xbf16>, vector<16x64xf32> -> vector<16x64xf32>
    %c0_3 = arith.constant 0 : index
    %c0_4 = arith.constant 0 : index
    %4 = vector.load %arg3[%c0_3, %c0_4] : memref<1x64xf32, #tpu.memory_space<vmem>>, vector<1x64xf32>
    %5 = vector.broadcast %4 : vector<1x64xf32> to vector<16x64xf32>
    %6 = arith.addf %3, %5 : vector<16x64xf32>
    %cst_5 = arith.constant 0.000000e+00 : f32
    %7 = vector.broadcast %cst_5 : f32 to vector<16x64xf32>
    %8 = arith.maximumf %6, %7 : vector<16x64xf32>
    %9 = arith.truncf %8 : vector<16x64xf32> to vector<16x64xbf16>
    %c0_6 = arith.constant 0 : index
    %c0_7 = arith.constant 0 : index
    %10 = vector.load %arg4[%c0_6, %c0_7] : memref<64x64xbf16, #tpu.memory_space<vmem>>, vector<64x64xbf16>
    %cst_8 = arith.constant dense<0.000000e+00> : vector<16x64xf32>
    %11 = tpu.matmul %9, %10, %cst_8 {dimension_numbers = #tpu.dot_dimension_numbers<[1], [0], [0], [1], [0, 0, 1, 1], [], []>} : vector<16x64xbf16>, vector<64x64xbf16>, vector<16x64xf32> -> vector<16x64xf32>
    %c0_9 = arith.constant 0 : index
    %c0_10 = arith.constant 0 : index
    %12 = vector.load %arg5[%c0_9, %c0_10] : memref<1x64xf32, #tpu.memory_space<vmem>>, vector<1x64xf32>
    %13 = vector.broadcast %12 : vector<1x64xf32> to vector<16x64xf32>
    %14 = arith.addf %11, %13 : vector<16x64xf32>
    %cst_11 = arith.constant 0.000000e+00 : f32
    %15 = vector.broadcast %cst_11 : f32 to vector<16x64xf32>
    %16 = arith.maximumf %14, %15 : vector<16x64xf32>
    %17 = arith.truncf %16 : vector<16x64xf32> to vector<16x64xbf16>
    %c0_12 = arith.constant 0 : index
    %c0_13 = arith.constant 0 : index
    %18 = vector.load %arg6[%c0_12, %c0_13] : memref<64x64xbf16, #tpu.memory_space<vmem>>, vector<64x64xbf16>
    %cst_14 = arith.constant dense<0.000000e+00> : vector<16x64xf32>
    %19 = tpu.matmul %17, %18, %cst_14 {dimension_numbers = #tpu.dot_dimension_numbers<[1], [0], [0], [1], [0, 0, 1, 1], [], []>} : vector<16x64xbf16>, vector<64x64xbf16>, vector<16x64xf32> -> vector<16x64xf32>
    %c0_15 = arith.constant 0 : index
    %c0_16 = arith.constant 0 : index
    %20 = vector.load %arg7[%c0_15, %c0_16] : memref<1x64xf32, #tpu.memory_space<vmem>>, vector<1x64xf32>
    %21 = vector.broadcast %20 : vector<1x64xf32> to vector<16x64xf32>
    %22 = arith.addf %19, %21 : vector<16x64xf32>
    %cst_17 = arith.constant 0.000000e+00 : f32
    %23 = vector.broadcast %cst_17 : f32 to vector<16x64xf32>
    %24 = arith.maximumf %22, %23 : vector<16x64xf32>
    %25 = arith.truncf %24 : vector<16x64xf32> to vector<16x64xbf16>
    %c0_18 = arith.constant 0 : index
    %c0_19 = arith.constant 0 : index
    %26 = vector.load %arg8[%c0_18, %c0_19] : memref<64x10xbf16, #tpu.memory_space<vmem>>, vector<64x10xbf16>
    %cst_20 = arith.constant dense<0.000000e+00> : vector<16x10xf32>
    %27 = tpu.matmul %25, %26, %cst_20 {dimension_numbers = #tpu.dot_dimension_numbers<[1], [0], [0], [1], [0, 0, 1, 1], [], []>} : vector<16x64xbf16>, vector<64x10xbf16>, vector<16x10xf32> -> vector<16x10xf32>
    %c0_21 = arith.constant 0 : index
    %c0_22 = arith.constant 0 : index
    %28 = vector.load %arg9[%c0_21, %c0_22] : memref<1x10xf32, #tpu.memory_space<vmem>>, vector<1x10xf32>
    %29 = vector.broadcast %28 : vector<1x10xf32> to vector<16x10xf32>
    %30 = arith.addf %27, %29 : vector<16x10xf32>
    %cst_23 = arith.constant dense<0xFF800000> : vector<16xf32>
    %31 = vector.multi_reduction <maximumf>, %30, %cst_23 [1] : vector<16x10xf32> to vector<16xf32>
    %32 = vector.shape_cast %31 : vector<16xf32> to vector<16x1xf32>
    %33 = vector.broadcast %32 : vector<16x1xf32> to vector<16x10xf32>
    %34 = arith.subf %30, %33 : vector<16x10xf32>
    %35 = math.exp %34 : vector<16x10xf32>
    %cst_24 = arith.constant dense<0.000000e+00> : vector<16xf32>
    %36 = vector.multi_reduction <add>, %35, %cst_24 [1] : vector<16x10xf32> to vector<16xf32>
    %37 = vector.shape_cast %36 : vector<16xf32> to vector<16x1xf32>
    %38 = math.log %37 : vector<16x1xf32>
    %39 = vector.broadcast %38 : vector<16x1xf32> to vector<16x10xf32>
    %40 = arith.subf %34, %39 : vector<16x10xf32>
    %c0_25 = arith.constant 0 : index
    %c0_26 = arith.constant 0 : index
    %41 = vector.load %arg10[%c0_25, %c0_26] : memref<16x10xf32, #tpu.memory_space<vmem>>, vector<16x10xf32>
    tpu.vector_store %arg10[%c0_25, %c0_26], %40 {strides = array<i32>} : memref<16x10xf32, #tpu.memory_space<vmem>>, vector<16x10xf32>,
    return
  }
  func.func @transform_0(%arg0: i32) -> (i32, i32) {
    %c0_i32 = arith.constant 0 : i32
    %c0_i32_0 = arith.constant 0 : i32
    return %arg0, %c0_i32 : i32, i32
  }
  func.func @transform_1(%arg0: i32) -> (i32, i32) {
    %c0_i32 = arith.constant 0 : i32
    %c0_i32_0 = arith.constant 0 : i32
    %c0_i32_1 = arith.constant 0 : i32
    return %c0_i32, %c0_i32_0 : i32, i32
  }
  func.func @transform_2(%arg0: i32) -> (i32, i32) {
    %c0_i32 = arith.constant 0 : i32
    %c0_i32_0 = arith.constant 0 : i32
    %c0_i32_1 = arith.constant 0 : i32
    return %c0_i32, %c0_i32_0 : i32, i32
  }
  func.func @transform_3(%arg0: i32) -> (i32, i32) {
    %c0_i32 = arith.constant 0 : i32
    %c0_i32_0 = arith.constant 0 : i32
    %c0_i32_1 = arith.constant 0 : i32
    return %c0_i32, %c0_i32_0 : i32, i32
  }
  func.func @transform_4(%arg0: i32) -> (i32, i32) {
    %c0_i32 = arith.constant 0 : i32
    %c0_i32_0 = arith.constant 0 : i32
    %c0_i32_1 = arith.constant 0 : i32
    return %c0_i32, %c0_i32_0 : i32, i32
  }
  func.func @transform_5(%arg0: i32) -> (i32, i32) {
    %c0_i32 = arith.constant 0 : i32
    %c0_i32_0 = arith.constant 0 : i32
    %c0_i32_1 = arith.constant 0 : i32
    return %c0_i32, %c0_i32_0 : i32, i32
  }
  func.func @transform_6(%arg0: i32) -> (i32, i32) {
    %c0_i32 = arith.constant 0 : i32
    %c0_i32_0 = arith.constant 0 : i32
    %c0_i32_1 = arith.constant 0 : i32
    return %c0_i32, %c0_i32_0 : i32, i32
  }
  func.func @transform_7(%arg0: i32) -> (i32, i32) {
    %c0_i32 = arith.constant 0 : i32
    %c0_i32_0 = arith.constant 0 : i32
    %c0_i32_1 = arith.constant 0 : i32
    return %c0_i32, %c0_i32_0 : i32, i32
  }
  func.func @transform_8(%arg0: i32) -> (i32, i32) {
    %c0_i32 = arith.constant 0 : i32
    %c0_i32_0 = arith.constant 0 : i32
    %c0_i32_1 = arith.constant 0 : i32
    return %c0_i32, %c0_i32_0 : i32, i32
  }
  func.func @transform_9(%arg0: i32) -> (i32, i32) {
    %c0_i32 = arith.constant 0 : i32
    %c0_i32_0 = arith.constant 0 : i32
    return %arg0, %c0_i32 : i32, i32
  }
}

</mosaic_0001>

<llo_original>
// kernel: tpu_custom_call.1
$region0: #{tpu_custom_call.1}
  #allocation0 [shape = 'u32[]', space=smem, size = 0x4, offset = 0x4, fixed_abs, tag = 'smem constant byte address 0x4 - core index']
  #allocation1 [shape = 'u32[144,128]{1,0:T(1,128)}', space=vmem, size = 0x12000, scoped, tag = 'internal scratch']
  %s0 = inlined_call_operand.vmem [shape: f32[20,784], index: 0, kind: input, shape index: {}]
  %s1 = inlined_call_operand.vmem [shape: bf16[784,64], index: 1, kind: input, shape index: {}]
  %s2 = inlined_call_operand.vmem [shape: f32[1,64], index: 2, kind: input, shape index: {}]
  %s3 = inlined_call_operand.vmem [shape: bf16[64,64], index: 3, kind: input, shape index: {}]
  %s4 = inlined_call_operand.vmem [shape: f32[1,64], index: 4, kind: input, shape index: {}]
  %s5 = inlined_call_operand.vmem [shape: bf16[64,64], index: 5, kind: input, shape index: {}]
  %s6 = inlined_call_operand.vmem [shape: f32[1,64], index: 6, kind: input, shape index: {}]
  %s7 = inlined_call_operand.vmem [shape: bf16[64,10], index: 7, kind: input, shape index: {}]
  %s8 = inlined_call_operand.vmem [shape: f32[1,10], index: 8, kind: input, shape index: {}]
  %s9 = inlined_call_operand.vmem [shape: f32[20,10], index: 9, kind: output, shape index: {}]
  %s10 = sld [smem:[#allocation0]]
  $region117: #{tpu_custom_call.1} parent=0
    _
  %s12 = ssub.s32 1, %s10
  %s13 = scalar_select 0, %s12, %s10
  $region1: #{tpu_custom_call.1} parent=0
    #allocation2 [shape = 'u8[16384]{0}', space=vmem, size = 0x4000, scoped, tag = 'output window, operand 0']
    loop: start=0, step=1, limit=4
    $region2: #{tpu_custom_call.1} parent=1 // loop_pre_header
      _
    $region3: #{tpu_custom_call.1} parent=1 // loop_header
      %s15 = sphi 0, %s19
      %p16 = scmp.ge.s32.totalorder %s15, 4
      %s25 = sphi 0, %s27
      %s28 = sphi 0, %s25
      %s29 = sphi 0, %s28
      %s45 = sphi 0, %s29
      %s49 = sphi 0, %s49
      %s51 = sphi 0, %s49
      %s52 = sphi 0, %s51
      %s66 = sphi 0, %s52
      %s70 = sphi 0, %s70
      %s72 = sphi 0, %s70
      %s73 = sphi 0, %s72
      %s87 = sphi 0, %s73
      %s91 = sphi 0, %s91
      %s93 = sphi 0, %s91
      %s94 = sphi 0, %s93
      %s108 = sphi 0, %s94
      %s112 = sphi 0, %s112
      %s114 = sphi 0, %s112
      %s115 = sphi 0, %s114
      %s129 = sphi 0, %s115
      %s133 = sphi 0, %s133
      %s135 = sphi 0, %s133
      %s136 = sphi 0, %s135
      %s150 = sphi 0, %s136
      %s154 = sphi 0, %s154
      %s156 = sphi 0, %s154
      %s157 = sphi 0, %s156
      %s171 = sphi 0, %s157
      %s175 = sphi 0, %s175
      %s177 = sphi 0, %s175
      %s178 = sphi 0, %s177
      %s192 = sphi 0, %s178
      %s196 = sphi 0, %s196
      %s198 = sphi 0, %s196
      %s199 = sphi 0, %s198
      %s213 = sphi 0, %s199
      %s219 = sphi 0, %s221
      %s222 = sphi 0, %s219
      %s223 = sphi 0, %s222
      %s239 = sphi 0, %s223
    $region4: #{tpu_custom_call.1} parent=1 // loop_header_branch
      %18 = sbr.rel (%p16) target = $region8
    $region5: #{tpu_custom_call.1} parent=1 // loop_body
      %s20 = ssub.s32 %s15, 1
      %s21 = ssub.s32 %s15, 2
      %s22 = sadd.s32 %s15, 1
      %s23 = ssub.s32 %s15, %s22
      %p24 = scmp.eq.s32.totalorder %s23, 0
      %s26 = sadd.s32 %s25, 1
      %s27 = scalar_select %p24, %s25, %s26
      %p30 = pneg %p24
      %p31 = scmp.eq.s32.totalorder %s15, 1
      %p32 = por %p30, %p31
      %p33 = scmp.ne.s32.totalorder %s25, %s28
      %p34 = scmp.eq.s32.totalorder %s15, 0
      %p35 = por %p33, %p34
      %p36 = scmp.ne.s32.totalorder %s25, %s28
      %p37 = scmp.eq.s32.totalorder %s20, 1
      %p38 = por %p36, %p37
      %p39 = scmp.ne.s32.totalorder %s28, %s29
      %p40 = scmp.eq.s32.totalorder %s20, 0
      %p41 = por %p39, %p40
      %p42 = scmp.ne.s32.totalorder %s28, %s29
      %p43 = scmp.eq.s32.totalorder %s21, 1
      %p44 = por %p42, %p43
      %p46 = scmp.ne.s32.totalorder %s29, %s45
      %p47 = scmp.eq.s32.totalorder %s21, 0
      %p48 = por %p46, %p47
      %s50 = sadd.s32 %s49, 1
      %p53 = scmp.eq.s32.totalorder %s15, 1
      %p54 = scmp.ne.s32.totalorder %s49, %s51
      %p55 = scmp.eq.s32.totalorder %s15, 0
      %p56 = por %p54, %p55
      %p57 = scmp.ne.s32.totalorder %s49, %s51
      %p58 = scmp.eq.s32.totalorder %s20, 1
      %p59 = por %p57, %p58
      %p60 = scmp.ne.s32.totalorder %s51, %s52
      %p61 = scmp.eq.s32.totalorder %s20, 0
      %p62 = por %p60, %p61
      %p63 = scmp.ne.s32.totalorder %s51, %s52
      %p64 = scmp.eq.s32.totalorder %s21, 1
      %p65 = por %p63, %p64
      %p67 = scmp.ne.s32.totalorder %s52, %s66
      %p68 = scmp.eq.s32.totalorder %s21, 0
      %p69 = por %p67, %p68
      %s71 = sadd.s32 %s70, 1
      %p74 = scmp.eq.s32.totalorder %s15, 1
      %p75 = scmp.ne.s32.totalorder %s70, %s72
      %p76 = scmp.eq.s32.totalorder %s15, 0
      %p77 = por %p75, %p76
      %p78 = scmp.ne.s32.totalorder %s70, %s72
      %p79 = scmp.eq.s32.totalorder %s20, 1
      %p80 = por %p78, %p79
      %p81 = scmp.ne.s32.totalorder %s72, %s73
      %p82 = scmp.eq.s32.totalorder %s20, 0
      %p83 = por %p81, %p82
      %p84 = scmp.ne.s32.totalorder %s72, %s73
      %p85 = scmp.eq.s32.totalorder %s21, 1
      %p86 = por %p84, %p85
      %p88 = scmp.ne.s32.totalorder %s73, %s87
      %p89 = scmp.eq.s32.totalorder %s21, 0
      %p90 = por %p88, %p89
      %s92 = sadd.s32 %s91, 1
      %p95 = scmp.eq.s32.totalorder %s15, 1
      %p96 = scmp.ne.s32.totalorder %s91, %s93
      %p97 = scmp.eq.s32.totalorder %s15, 0
      %p98 = por %p96, %p97
      %p99 = scmp.ne.s32.totalorder %s91, %s93
      %p100 = scmp.eq.s32.totalorder %s20, 1
      %p101 = por %p99, %p100
      %p102 = scmp.ne.s32.totalorder %s93, %s94
      %p103 = scmp.eq.s32.totalorder %s20, 0
      %p104 = por %p102, %p103
      %p105 = scmp.ne.s32.totalorder %s93, %s94
      %p106 = scmp.eq.s32.totalorder %s21, 1
      %p107 = por %p105, %p106
      %p109 = scmp.ne.s32.totalorder %s94, %s108
      %p110 = scmp.eq.s32.totalorder %s21, 0
      %p111 = por %p109, %p110
      %s113 = sadd.s32 %s112, 1
      %p116 = scmp.eq.s32.totalorder %s15, 1
      %p117 = scmp.ne.s32.totalorder %s112, %s114
      %p118 = scmp.eq.s32.totalorder %s15, 0
      %p119 = por %p117, %p118
      %p120 = scmp.ne.s32.totalorder %s112, %s114
      %p121 = scmp.eq.s32.totalorder %s20, 1
      %p122 = por %p120, %p121
      %p123 = scmp.ne.s32.totalorder %s114, %s115
      %p124 = scmp.eq.s32.totalorder %s20, 0
      %p125 = por %p123, %p124
      %p126 = scmp.ne.s32.totalorder %s114, %s115
      %p127 = scmp.eq.s32.totalorder %s21, 1
      %p128 = por %p126, %p127
      %p130 = scmp.ne.s32.totalorder %s115, %s129
      %p131 = scmp.eq.s32.totalorder %s21, 0
      %p132 = por %p130, %p131
      %s134 = sadd.s32 %s133, 1
      %p137 = scmp.eq.s32.totalorder %s15, 1
      %p138 = scmp.ne.s32.totalorder %s133, %s135
      %p139 = scmp.eq.s32.totalorder %s15, 0
      %p140 = por %p138, %p139
      %p141 = scmp.ne.s32.totalorder %s133, %s135
      %p142 = scmp.eq.s32.totalorder %s20, 1
      %p143 = por %p141, %p142
      %p144 = scmp.ne.s32.totalorder %s135, %s136
      %p145 = scmp.eq.s32.totalorder %s20, 0
      %p146 = por %p144, %p145
      %p147 = scmp.ne.s32.totalorder %s135, %s136
      %p148 = scmp.eq.s32.totalorder %s21, 1
      %p149 = por %p147, %p148
      %p151 = scmp.ne.s32.totalorder %s136, %s150
      %p152 = scmp.eq.s32.totalorder %s21, 0
      %p153 = por %p151, %p152
      %s155 = sadd.s32 %s154, 1
      %p158 = scmp.eq.s32.totalorder %s15, 1
      %p159 = scmp.ne.s32.totalorder %s154, %s156
      %p160 = scmp.eq.s32.totalorder %s15, 0
      %p161 = por %p159, %p160
      %p162 = scmp.ne.s32.totalorder %s154, %s156
      %p163 = scmp.eq.s32.totalorder %s20, 1
      %p164 = por %p162, %p163
      %p165 = scmp.ne.s32.totalorder %s156, %s157
      %p166 = scmp.eq.s32.totalorder %s20, 0
      %p167 = por %p165, %p166
      %p168 = scmp.ne.s32.totalorder %s156, %s157
      %p169 = scmp.eq.s32.totalorder %s21, 1
      %p170 = por %p168, %p169
      %p172 = scmp.ne.s32.totalorder %s157, %s171
      %p173 = scmp.eq.s32.totalorder %s21, 0
      %p174 = por %p172, %p173
      %s176 = sadd.s32 %s175, 1
      %p179 = scmp.eq.s32.totalorder %s15, 1
      %p180 = scmp.ne.s32.totalorder %s175, %s177
      %p181 = scmp.eq.s32.totalorder %s15, 0
      %p182 = por %p180, %p181
      %p183 = scmp.ne.s32.totalorder %s175, %s177
      %p184 = scmp.eq.s32.totalorder %s20, 1
      %p185 = por %p183, %p184
      %p186 = scmp.ne.s32.totalorder %s177, %s178
      %p187 = scmp.eq.s32.totalorder %s20, 0
      %p188 = por %p186, %p187
      %p189 = scmp.ne.s32.totalorder %s177, %s178
      %p190 = scmp.eq.s32.totalorder %s21, 1
      %p191 = por %p189, %p190
      %p193 = scmp.ne.s32.totalorder %s178, %s192
      %p194 = scmp.eq.s32.totalorder %s21, 0
      %p195 = por %p193, %p194
      %s197 = sadd.s32 %s196, 1
      %p200 = scmp.eq.s32.totalorder %s15, 1
      %p201 = scmp.ne.s32.totalorder %s196, %s198
      %p202 = scmp.eq.s32.totalorder %s15, 0
      %p203 = por %p201, %p202
      %p204 = scmp.ne.s32.totalorder %s196, %s198
      %p205 = scmp.eq.s32.totalorder %s20, 1
      %p206 = por %p204, %p205
      %p207 = scmp.ne.s32.totalorder %s198, %s199
      %p208 = scmp.eq.s32.totalorder %s20, 0
      %p209 = por %p207, %p208
      %p210 = scmp.ne.s32.totalorder %s198, %s199
      %p211 = scmp.eq.s32.totalorder %s21, 1
      %p212 = por %p210, %p211
      %p214 = scmp.ne.s32.totalorder %s199, %s213
      %p215 = scmp.eq.s32.totalorder %s21, 0
      %p216 = por %p214, %p215
      %s217 = ssub.s32 %s15, %s22
      %p218 = scmp.eq.s32.totalorder %s217, 0
      %s220 = sadd.s32 %s219, 1
      %s221 = scalar_select %p218, %s219, %s220
      %p224 = pneg %p218
      %p225 = scmp.eq.s32.totalorder %s15, 1
      %p226 = por %p224, %p225
      %p227 = scmp.ne.s32.totalorder %s219, %s222
      %p228 = scmp.eq.s32.totalorder %s15, 0
      %p229 = por %p227, %p228
      %p230 = scmp.ne.s32.totalorder %s219, %s222
      %p231 = scmp.eq.s32.totalorder %s20, 1
      %p232 = por %p230, %p231
      %p233 = scmp.ne.s32.totalorder %s222, %s223
      %p234 = scmp.eq.s32.totalorder %s20, 0
      %p235 = por %p233, %p234
      %p236 = scmp.ne.s32.totalorder %s222, %s223
      %p237 = scmp.eq.s32.totalorder %s21, 1
      %p238 = por %p236, %p237
      %p240 = scmp.ne.s32.totalorder %s223, %s239
      %p241 = scmp.eq.s32.totalorder %s21, 0
      %p242 = por %p240, %p241
      %p243 = scmp.le.s32.totalorder 1, %s15
      %p244 = scmp.lt.s32.totalorder %s15, 3
      %p245 = pnand %p243, %p244
      %p246 = pneg %p245
      // Predicated region
      $region9: #{tpu_custom_call.1} parent=5 // pred_check
        _
      $region10: #{tpu_custom_call.1} parent=5 // pred_check_branch
        %248 = sbr.rel (%p245) target = $region12
      $region11: #{tpu_custom_call.1} parent=5 // pred_region
        %s249 = ssub.s32 %s15, 1
        // Predicated region
        $region13: #{tpu_custom_call.1} parent=11 // pred_check
          %p250 = pneg %p62
        $region14: #{tpu_custom_call.1} parent=11 // pred_check_branch
          %252 = sbr.rel (%p250) target = $region16
        $region15: #{tpu_custom_call.1} parent=11 // pred_region
          _
        $region16: #{tpu_custom_call.1} parent=11 // pred_fallthru
          _
        // Predicated region
        $region17: #{tpu_custom_call.1} parent=11 // pred_check
          %p253 = pneg %p83
        $region18: #{tpu_custom_call.1} parent=11 // pred_check_branch
          %255 = sbr.rel (%p253) target = $region20
        $region19: #{tpu_custom_call.1} parent=11 // pred_region
          _
        $region20: #{tpu_custom_call.1} parent=11 // pred_fallthru
          _
        // Predicated region
        $region21: #{tpu_custom_call.1} parent=11 // pred_check
          %p256 = pneg %p104
        $region22: #{tpu_custom_call.1} parent=11 // pred_check_branch
          %258 = sbr.rel (%p256) target = $region24
        $region23: #{tpu_custom_call.1} parent=11 // pred_region
          _
        $region24: #{tpu_custom_call.1} parent=11 // pred_fallthru
          _
        // Predicated region
        $region25: #{tpu_custom_call.1} parent=11 // pred_check
          %p259 = pneg %p125
        $region26: #{tpu_custom_call.1} parent=11 // pred_check_branch
          %261 = sbr.rel (%p259) target = $region28
        $region27: #{tpu_custom_call.1} parent=11 // pred_region
          _
        $region28: #{tpu_custom_call.1} parent=11 // pred_fallthru
          _
        // Predicated region
        $region29: #{tpu_custom_call.1} parent=11 // pred_check
          %p262 = pneg %p146
        $region30: #{tpu_custom_call.1} parent=11 // pred_check_branch
          %264 = sbr.rel (%p262) target = $region32
        $region31: #{tpu_custom_call.1} parent=11 // pred_region
          _
        $region32: #{tpu_custom_call.1} parent=11 // pred_fallthru
          _
        // Predicated region
        $region33: #{tpu_custom_call.1} parent=11 // pred_check
          %p265 = pneg %p167
        $region34: #{tpu_custom_call.1} parent=11 // pred_check_branch
          %267 = sbr.rel (%p265) target = $region36
        $region35: #{tpu_custom_call.1} parent=11 // pred_region
          _
        $region36: #{tpu_custom_call.1} parent=11 // pred_fallthru
          _
        // Predicated region
        $region37: #{tpu_custom_call.1} parent=11 // pred_check
          %p268 = pneg %p188
        $region38: #{tpu_custom_call.1} parent=11 // pred_check_branch
          %270 = sbr.rel (%p268) target = $region40
        $region39: #{tpu_custom_call.1} parent=11 // pred_region
          _
        $region40: #{tpu_custom_call.1} parent=11 // pred_fallthru
          _
        // Predicated region
        $region41: #{tpu_custom_call.1} parent=11 // pred_check
          %p271 = pneg %p209
        $region42: #{tpu_custom_call.1} parent=11 // pred_check_branch
          %273 = sbr.rel (%p271) target = $region44
        $region43: #{tpu_custom_call.1} parent=11 // pred_region
          _
        $region44: #{tpu_custom_call.1} parent=11 // pred_fallthru
          _
      $region12: #{tpu_custom_call.1} parent=5 // pred_fallthru
        _
      %p274 = scmp.lt.s32.totalorder %s15, 2
      // Predicated region
      $region45: #{tpu_custom_call.1} parent=5 // pred_check
        %p275 = pneg %p274
      $region46: #{tpu_custom_call.1} parent=5 // pred_check_branch
        %277 = sbr.rel (%p275) target = $region48
      $region47: #{tpu_custom_call.1} parent=5 // pred_region
        // Predicated region
        $region49: #{tpu_custom_call.1} parent=47 // pred_check
          %p278 = pneg %p35
        $region50: #{tpu_custom_call.1} parent=47 // pred_check_branch
          %280 = sbr.rel (%p278) target = $region52
        $region51: #{tpu_custom_call.1} parent=47 // pred_region
          %s281 = smul.u32 2, %s15
          %s282 = ssub.s32 3, %s281
          %p283 = scmp.lt.s32.totalorder %s282, 2
          %s284 = scalar_select %p283, %s282, 2
          %s285 = smul.u32 128, %s284
          %s286 = smul.u32 %s285, 7
          %p287 = scmp.lt.s32.totalorder %s281, 2
          %s288 = scalar_select %p287, %s281, 2
          %s289 = smul.addr %s288, 7
          %s290 = smul.addr %s289, 8
          %s291 = scalar_lea.vmem %s0, %s290
          %s292 = smul.u32 2, %s15
          %s293 = ssub.s32 3, %s292
          %p294 = scmp.lt.s32.totalorder %s293, 2
          %s295 = scalar_select %p294, %s293, 2
          %s296 = smul.u32 128, %s295
          %s297 = smul.u32 %s296, 7
        $region52: #{tpu_custom_call.1} parent=47 // pred_fallthru
          _
      $region48: #{tpu_custom_call.1} parent=5 // pred_fallthru
        _
      %p298 = scmp.le.s32.totalorder 1, %s15
      %p299 = scmp.lt.s32.totalorder %s15, 3
      %p300 = pnand %p298, %p299
      %p301 = pneg %p300
      // Predicated region
      $region53: #{tpu_custom_call.1} parent=5 // pred_check
        _
      $region54: #{tpu_custom_call.1} parent=5 // pred_check_branch
        %303 = sbr.rel (%p300) target = $region56
      $region55: #{tpu_custom_call.1} parent=5 // pred_region
        %s304 = ssub.s32 %s15, 1
        %s305 = smul.u32 2, %s20
        %s306 = ssub.s32 3, %s305
        %p307 = scmp.lt.s32.totalorder %s306, 2
        %s308 = scalar_select %p307, %s306, 2
        %s309 = smul.u32 128, %s308
        %s310 = smul.u32 %s309, 7
        %p311 = scmp.lt.s32.totalorder %s305, 2
        %s312 = scalar_select %p311, %s305, 2
        %s313 = smul.addr %s312, 7
        %s314 = smul.addr %s313, 8
        %s315 = scalar_lea.vmem %s0, %s314
        %p316 = pneg %p41
        %p317 = pneg %p38
        %p318 = pneg %p62
        %p319 = pneg %p59
        %p320 = pneg %p83
        %p321 = pneg %p80
        %p322 = pneg %p104
        %p323 = pneg %p101
        %p324 = pneg %p125
        %p325 = pneg %p122
        %p326 = pneg %p146
        %p327 = pneg %p143
        %p328 = pneg %p167
        %p329 = pneg %p164
        %p330 = pneg %p188
        %p331 = pneg %p185
        %p332 = pneg %p209
        %p333 = pneg %p206
        %p334 = pneg %p235
        %p335 = pneg %p232
        %s336 = sand.u32 %s222, 1
        %s337 = sand.u32 %s222, 1
        %s338 = smul.addr %s337, 16
        %s339 = scalar_lea.vmem [#allocation2], %s338
        %s340 = smul.u32 2, %s20
        %s341 = ssub.s32 3, %s340
        %p342 = scmp.lt.s32.totalorder %s341, 2
        %s343 = scalar_select %p342, %s341, 2
        %s344 = smul.u32 128, %s343
        %s345 = smul.u32 %s344, 7
        %p346 = scmp.lt.s32.totalorder %s340, 2
        %s347 = scalar_select %p346, %s340, 2
        %s348 = smul.addr %s347, 7
        %s349 = smul.addr %s348, 8
        %s350 = scalar_lea.vmem %s0, %s349
        %s351 = smul.u32 2, %s20
        %s352 = ssub.s32 3, %s351
        %p353 = scmp.lt.s32.totalorder %s352, 2
        %s354 = scalar_select %p353, %s352, 2
        %s355 = smul.u32 128, %s354
        %s356 = smul.u32 %s355, 7
        %s357 = smul.u32 2, %s20
        %s358 = ssub.s32 3, %s357
        %p359 = scmp.lt.s32.totalorder %s358, 2
        %s360 = scalar_select %p359, %s358, 2
        %s361 = smul.u32 128, %s360
        %v363 = vld [vmem:[%s350] sm:$0xff]
        %v364 = vld [vmem:[%s350 + $0x8] sm:$0xff]
        %v365 = vld [vmem:[%s350 + $0x10] sm:$0xff]
        %v366 = vld [vmem:[%s350 + $0x18] sm:$0xff]
        %v367 = vld [vmem:[%s350 + $0x20] sm:$0xff]
        %v368 = vld [vmem:[%s350 + $0x28] sm:$0xff]
        %v369 = vld [vmem:[%s350 + $0x30] sm:$0xff]
        %v370 = vld [vmem:[%s350 + $0x38] sm:$0xff]
        %v371 = vld [vmem:[%s350 + $0x40] sm:$0xff]
        %v372 = vld [vmem:[%s350 + $0x48] sm:$0xff]
        %v373 = vld [vmem:[%s350 + $0x50] sm:$0xff]
        %v374 = vld [vmem:[%s350 + $0x58] sm:$0xff]
        %v375 = vld [vmem:[%s350 + $0x60] sm:$0xff]
        %v376 = vld [vmem:[%s350 + $0x68] sm:$0xff]
        %v377 = vpack.c.bf16 %v370, %v363
        %v378 = vpack.c.bf16 %v371, %v364
        %v379 = vpack.c.bf16 %v372, %v365
        %v380 = vpack.c.bf16 %v373, %v366
        %v381 = vpack.c.bf16 %v374, %v367
        %v382 = vpack.c.bf16 %v375, %v368
        %v383 = vpack.c.bf16 %v376, %v369
        %v384 = vld [vmem:[%s1] sm:$0xf]
        %v385 = vld [vmem:[%s1 + $0x4] sm:$0xf]
        %v386 = vld [vmem:[%s1 + $0x8] sm:$0xf]
        %v387 = vld [vmem:[%s1 + $0xc] sm:$0xf]
        %v388 = vld [vmem:[%s1 + $0x10] sm:$0xf]
        %v389 = vld [vmem:[%s1 + $0x14] sm:$0xf]
        %v390 = vld [vmem:[%s1 + $0x18] sm:$0xf]
        %v391 = vld [vmem:[%s1 + $0x1c] sm:$0xf]
        %v392 = vld [vmem:[%s1 + $0x20] sm:$0xf]
        %v393 = vld [vmem:[%s1 + $0x24] sm:$0xf]
        %v394 = vld [vmem:[%s1 + $0x28] sm:$0xf]
        %v395 = vld [vmem:[%s1 + $0x2c] sm:$0xf]
        %v396 = vld [vmem:[%s1 + $0x30] sm:$0xf]
        %v397 = vld [vmem:[%s1 + $0x34] sm:$0xf]
        %v398 = vld [vmem:[%s1 + $0x38] sm:$0xf]
        %v399 = vld [vmem:[%s1 + $0x3c] sm:$0xf]
        %v400 = vld [vmem:[%s1 + $0x40] sm:$0xf]
        %v401 = vld [vmem:[%s1 + $0x44] sm:$0xf]
        %v402 = vld [vmem:[%s1 + $0x48] sm:$0xf]
        %v403 = vld [vmem:[%s1 + $0x4c] sm:$0xf]
        %v404 = vld [vmem:[%s1 + $0x50] sm:$0xf]
        %v405 = vld [vmem:[%s1 + $0x54] sm:$0xf]
        %v406 = vld [vmem:[%s1 + $0x58] sm:$0xf]
        %v407 = vld [vmem:[%s1 + $0x5c] sm:$0xf]
        %v408 = vld [vmem:[%s1 + $0x60] sm:$0xf]
        %v409 = vld [vmem:[%s1 + $0x64] sm:$0xf]
        %v410 = vld [vmem:[%s1 + $0x68] sm:$0xf]
        %v411 = vld [vmem:[%s1 + $0x6c] sm:$0xf]
        %v412 = vld [vmem:[%s1 + $0x70] sm:$0xf]
        %v413 = vld [vmem:[%s1 + $0x74] sm:$0xf]
        %v414 = vld [vmem:[%s1 + $0x78] sm:$0xf]
        %v415 = vld [vmem:[%s1 + $0x7c] sm:$0xf]
        %v416 = vld [vmem:[%s1 + $0x80] sm:$0xf]
        %v417 = vld [vmem:[%s1 + $0x84] sm:$0xf]
        %v418 = vld [vmem:[%s1 + $0x88] sm:$0xf]
        %v419 = vld [vmem:[%s1 + $0x8c] sm:$0xf]
        %v420 = vld [vmem:[%s1 + $0x90] sm:$0xf]
        %v421 = vld [vmem:[%s1 + $0x94] sm:$0xf]
        %v422 = vld [vmem:[%s1 + $0x98] sm:$0xf]
        %v423 = vld [vmem:[%s1 + $0x9c] sm:$0xf]
        %v424 = vld [vmem:[%s1 + $0xa0] sm:$0xf]
        %v425 = vld [vmem:[%s1 + $0xa4] sm:$0xf]
        %v426 = vld [vmem:[%s1 + $0xa8] sm:$0xf]
        %v427 = vld [vmem:[%s1 + $0xac] sm:$0xf]
        %v428 = vld [vmem:[%s1 + $0xb0] sm:$0xf]
        %v429 = vld [vmem:[%s1 + $0xb4] sm:$0xf]
        %v430 = vld [vmem:[%s1 + $0xb8] sm:$0xf]
        %v431 = vld [vmem:[%s1 + $0xbc] sm:$0xf]
        %v432 = vld [vmem:[%s1 + $0xc0] sm:$0xf]
        %v433 = vld [vmem:[%s1 + $0xc4] sm:$0xf]
        %v434 = vld [vmem:[%s1 + $0xc8] sm:$0xf]
        %v435 = vld [vmem:[%s1 + $0xcc] sm:$0xf]
        %v436 = vld [vmem:[%s1 + $0xd0] sm:$0xf]
        %v437 = vld [vmem:[%s1 + $0xd4] sm:$0xf]
        %v438 = vld [vmem:[%s1 + $0xd8] sm:$0xf]
        %v439 = vld [vmem:[%s1 + $0xdc] sm:$0xf]
        %v440 = vld [vmem:[%s1 + $0xe0] sm:$0xf]
        %v441 = vld [vmem:[%s1 + $0xe4] sm:$0xf]
        %v442 = vld [vmem:[%s1 + $0xe8] sm:$0xf]
        %v443 = vld [vmem:[%s1 + $0xec] sm:$0xf]
        %v444 = vld [vmem:[%s1 + $0xf0] sm:$0xf]
        %v445 = vld [vmem:[%s1 + $0xf4] sm:$0xf]
        %v446 = vld [vmem:[%s1 + $0xf8] sm:$0xf]
        %v447 = vld [vmem:[%s1 + $0xfc] sm:$0xf]
        %v448 = vld [vmem:[%s1 + $0x100] sm:$0xf]
        %v449 = vld [vmem:[%s1 + $0x104] sm:$0xf]
        %v450 = vld [vmem:[%s1 + $0x108] sm:$0xf]
        %v451 = vld [vmem:[%s1 + $0x10c] sm:$0xf]
        %v452 = vld [vmem:[%s1 + $0x110] sm:$0xf]
        %v453 = vld [vmem:[%s1 + $0x114] sm:$0xf]
        %v454 = vld [vmem:[%s1 + $0x118] sm:$0xf]
        %v455 = vld [vmem:[%s1 + $0x11c] sm:$0xf]
        %v456 = vld [vmem:[%s1 + $0x120] sm:$0xf]
        %v457 = vld [vmem:[%s1 + $0x124] sm:$0xf]
        %v458 = vld [vmem:[%s1 + $0x128] sm:$0xf]
        %v459 = vld [vmem:[%s1 + $0x12c] sm:$0xf]
        %v460 = vld [vmem:[%s1 + $0x130] sm:$0xf]
        %v461 = vld [vmem:[%s1 + $0x134] sm:$0xf]
        %v462 = vld [vmem:[%s1 + $0x138] sm:$0xf]
        %v463 = vld [vmem:[%s1 + $0x13c] sm:$0xf]
        %v464 = vld [vmem:[%s1 + $0x140] sm:$0xf]
        %v465 = vld [vmem:[%s1 + $0x144] sm:$0xf]
        %v466 = vld [vmem:[%s1 + $0x148] sm:$0xf]
        %v467 = vld [vmem:[%s1 + $0x14c] sm:$0xf]
        %v468 = vld [vmem:[%s1 + $0x150] sm:$0xf]
        %v469 = vld [vmem:[%s1 + $0x154] sm:$0xf]
        %v470 = vld [vmem:[%s1 + $0x158] sm:$0xf]
        %v471 = vld [vmem:[%s1 + $0x15c] sm:$0xf]
        %v472 = vld [vmem:[%s1 + $0x160] sm:$0xf]
        %v473 = vld [vmem:[%s1 + $0x164] sm:$0xf]
        %v474 = vld [vmem:[%s1 + $0x168] sm:$0xf]
        %v475 = vld [vmem:[%s1 + $0x16c] sm:$0xf]
        %v476 = vld [vmem:[%s1 + $0x170] sm:$0xf]
        %v477 = vld [vmem:[%s1 + $0x174] sm:$0xf]
        %v478 = vld [vmem:[%s1 + $0x178] sm:$0xf]
        %v479 = vld [vmem:[%s1 + $0x17c] sm:$0xf]
        %v480 = vld [vmem:[%s1 + $0x180] sm:$0xf]
        %v481 = vld [vmem:[%s1 + $0x184] sm:$0xf]
        %v482 = vld [vmem:[%s2] sm:$0x1]
        %v484 = vlaneseq
        %v485 = vshrl.u32 %v484, 7
        %v486 = vsub.s32 0, %v485
        %v487 = vrot.slane %v482, %v486
        %v587 = vunpack.c.l.b16 %v384
        %v588 = vunpack.c.l.b16 %v385
        %v589 = vunpack.c.l.b16 %v386
        %v590 = vunpack.c.l.b16 %v387
        %v591 = vunpack.c.l.b16 %v388
        %v592 = vunpack.c.l.b16 %v389
        %v593 = vunpack.c.l.b16 %v390
        %v594 = vunpack.c.l.b16 %v391
        %v595 = vunpack.c.l.b16 %v392
        %v596 = vunpack.c.l.b16 %v393
        %v597 = vunpack.c.l.b16 %v394
        %v598 = vunpack.c.l.b16 %v395
        %v599 = vunpack.c.l.b16 %v396
        %v600 = vunpack.c.l.b16 %v397
        %v601 = vunpack.c.l.b16 %v398
        %v602 = vunpack.c.l.b16 %v399
        %v603 = vunpack.c.l.b16 %v400
        %v604 = vunpack.c.l.b16 %v401
        %v605 = vunpack.c.l.b16 %v402
        %v606 = vunpack.c.l.b16 %v403
        %v607 = vunpack.c.l.b16 %v404
        %v608 = vunpack.c.l.b16 %v405
        %v609 = vunpack.c.l.b16 %v406
        %v610 = vunpack.c.l.b16 %v407
        %v611 = vunpack.c.l.b16 %v408
        %v612 = vunpack.c.l.b16 %v409
        %v613 = vunpack.c.l.b16 %v410
        %v614 = vunpack.c.l.b16 %v411
        %v615 = vunpack.c.l.b16 %v412
        %v616 = vunpack.c.l.b16 %v413
        %v617 = vunpack.c.l.b16 %v414
        %v618 = vunpack.c.l.b16 %v415
        %v619 = vunpack.c.l.b16 %v416
        %v620 = vunpack.c.l.b16 %v417
        %v621 = vunpack.c.l.b16 %v418
        %v622 = vunpack.c.l.b16 %v419
        %v623 = vunpack.c.l.b16 %v420
        %v624 = vunpack.c.l.b16 %v421
        %v625 = vunpack.c.l.b16 %v422
        %v626 = vunpack.c.l.b16 %v423
        %v627 = vunpack.c.l.b16 %v424
        %v628 = vunpack.c.l.b16 %v425
        %v629 = vunpack.c.l.b16 %v426
        %v630 = vunpack.c.l.b16 %v427
        %v631 = vunpack.c.l.b16 %v428
        %v632 = vunpack.c.l.b16 %v429
        %v633 = vunpack.c.l.b16 %v430
        %v634 = vunpack.c.l.b16 %v431
        %v635 = vunpack.c.l.b16 %v432
        %v636 = vunpack.c.l.b16 %v433
        %v637 = vunpack.c.l.b16 %v434
        %v638 = vunpack.c.l.b16 %v435
        %v639 = vunpack.c.l.b16 %v436
        %v640 = vunpack.c.l.b16 %v437
        %v641 = vunpack.c.l.b16 %v438
        %v642 = vunpack.c.l.b16 %v439
        %v643 = vunpack.c.l.b16 %v440
        %v644 = vunpack.c.l.b16 %v441
        %v645 = vunpack.c.l.b16 %v442
        %v646 = vunpack.c.l.b16 %v443
        %v647 = vunpack.c.l.b16 %v444
        %v648 = vunpack.c.l.b16 %v445
        %v649 = vunpack.c.l.b16 %v446
        %v650 = vunpack.c.l.b16 %v447
        %v651 = vunpack.c.l.b16 %v448
        %v652 = vunpack.c.l.b16 %v449
        %v653 = vunpack.c.l.b16 %v450
        %v654 = vunpack.c.l.b16 %v451
        %v655 = vunpack.c.l.b16 %v452
        %v656 = vunpack.c.l.b16 %v453
        %v657 = vunpack.c.l.b16 %v454
        %v658 = vunpack.c.l.b16 %v455
        %v659 = vunpack.c.l.b16 %v456
        %v660 = vunpack.c.l.b16 %v457
        %v661 = vunpack.c.l.b16 %v458
        %v662 = vunpack.c.l.b16 %v459
        %v663 = vunpack.c.l.b16 %v460
        %v664 = vunpack.c.l.b16 %v461
        %v665 = vunpack.c.l.b16 %v462
        %v666 = vunpack.c.l.b16 %v463
        %v667 = vunpack.c.l.b16 %v464
        %v668 = vunpack.c.l.b16 %v465
        %v669 = vunpack.c.l.b16 %v466
        %v670 = vunpack.c.l.b16 %v467
        %v671 = vunpack.c.l.b16 %v468
        %v672 = vunpack.c.l.b16 %v469
        %v673 = vunpack.c.l.b16 %v470
        %v674 = vunpack.c.l.b16 %v471
        %v675 = vunpack.c.l.b16 %v472
        %v676 = vunpack.c.l.b16 %v473
        %v677 = vunpack.c.l.b16 %v474
        %v678 = vunpack.c.l.b16 %v475
        %v679 = vunpack.c.l.b16 %v476
        %v680 = vunpack.c.l.b16 %v477
        %v681 = vunpack.c.l.b16 %v478
        %v682 = vunpack.c.l.b16 %v479
        %v683 = vunpack.c.l.b16 %v480
        %v684 = vunpack.c.l.b16 %v481
        %v685 = vpack.c.b16 %v588, %v587
        %v686 = vpack.c.b16 %v590, %v589
        %v687 = vpack.c.b16 %v592, %v591
        %v688 = vpack.c.b16 %v594, %v593
        %v689 = vpack.c.b16 %v596, %v595
        %v690 = vpack.c.b16 %v598, %v597
        %v691 = vpack.c.b16 %v600, %v599
        %v692 = vpack.c.b16 %v602, %v601
        %v693 = vpack.c.b16 %v604, %v603
        %v694 = vpack.c.b16 %v606, %v605
        %v695 = vpack.c.b16 %v608, %v607
        %v696 = vpack.c.b16 %v610, %v609
        %v697 = vpack.c.b16 %v612, %v611
        %v698 = vpack.c.b16 %v614, %v613
        %v699 = vpack.c.b16 %v616, %v615
        %v700 = vpack.c.b16 %v618, %v617
        %v701 = vpack.c.b16 %v620, %v619
        %v702 = vpack.c.b16 %v622, %v621
        %v703 = vpack.c.b16 %v624, %v623
        %v704 = vpack.c.b16 %v626, %v625
        %v705 = vpack.c.b16 %v628, %v627
        %v706 = vpack.c.b16 %v630, %v629
        %v707 = vpack.c.b16 %v632, %v631
        %v708 = vpack.c.b16 %v634, %v633
        %v709 = vpack.c.b16 %v636, %v635
        %v710 = vpack.c.b16 %v638, %v637
        %v711 = vpack.c.b16 %v640, %v639
        %v712 = vpack.c.b16 %v642, %v641
        %v713 = vpack.c.b16 %v644, %v643
        %v714 = vpack.c.b16 %v646, %v645
        %v715 = vpack.c.b16 %v648, %v647
        %v716 = vpack.c.b16 %v650, %v649
        %v717 = vpack.c.b16 %v652, %v651
        %v718 = vpack.c.b16 %v654, %v653
        %v719 = vpack.c.b16 %v656, %v655
        %v720 = vpack.c.b16 %v658, %v657
        %v721 = vpack.c.b16 %v660, %v659
        %v722 = vpack.c.b16 %v662, %v661
        %v723 = vpack.c.b16 %v664, %v663
        %v724 = vpack.c.b16 %v666, %v665
        %v725 = vpack.c.b16 %v668, %v667
        %v726 = vpack.c.b16 %v670, %v669
        %v727 = vpack.c.b16 %v672, %v671
        %v728 = vpack.c.b16 %v674, %v673
        %v729 = vpack.c.b16 %v676, %v675
        %v730 = vpack.c.b16 %v678, %v677
        %v731 = vpack.c.b16 %v680, %v679
        %v732 = vpack.c.b16 %v682, %v681
        %v733 = vpack.c.b16 %v684, %v683
        %vm783 = vcmask 130048
        %v785 = vsel %vm783, %v383, 0
        %787 = vmatprep.subr.bf16.mxu0 0
        %788 = vmatpush1.bf16.msra.mxu0 %v685
        %789 = vmatprep.subr.bf16.mxu0 0
        %790 = vmatpush1.bf16.msra.mxu0 %v686
        %791 = vmatprep.subr.bf16.mxu0 0
        %792 = vmatpush1.bf16.msra.mxu0 %v687
        %793 = vmatprep.subr.bf16.mxu0 0
        %794 = vmatpush1.bf16.msra.mxu0 %v688
        %795 = vmatprep.subr.bf16.mxu0 0
        %796 = vmatpush1.bf16.msra.mxu0 %v689
        %797 = vmatprep.subr.bf16.mxu0 0
        %798 = vmatpush1.bf16.msra.mxu0 %v690
        %799 = vmatprep.subr.bf16.mxu0 0
        %800 = vmatpush1.bf16.msra.mxu0 %v691
        %801 = vmatprep.subr.bf16.mxu0 0
        %802 = vmatpush1.bf16.msra.mxu0 %v692
        %803 = vmatprep.subr.bf16.mxu0 0
        %804 = vmatpush1.bf16.msra.mxu0 %v693
        %805 = vmatprep.subr.bf16.mxu0 0
        %806 = vmatpush1.bf16.msra.mxu0 %v694
        %807 = vmatprep.subr.bf16.mxu0 0
        %808 = vmatpush1.bf16.msra.mxu0 %v695
        %809 = vmatprep.subr.bf16.mxu0 0
        %810 = vmatpush1.bf16.msra.mxu0 %v696
        %811 = vmatprep.subr.bf16.mxu0 0
        %812 = vmatpush1.bf16.msra.mxu0 %v697
        %813 = vmatprep.subr.bf16.mxu0 0
        %814 = vmatpush1.bf16.msra.mxu0 %v698
        %815 = vmatprep.subr.bf16.mxu0 0
        %816 = vmatpush1.bf16.msra.mxu0 %v699
        %817 = vmatprep.subr.bf16.mxu0 0
        %818 = vmatpush1.bf16.msra.mxu0 %v700
        %819 = vmatprep.mubr.bf16.mxu0 %v378
        %820 = vmatmul.mubr.bf16.gmra.mrb[0].mxu0 %v377
        %v821 = vpop.f32.mrb[0].mxu0
        %v822 = vadd.f32 %v487, %v821
        %v823 = vpop.f32.mrb[0].mxu0
        %v824 = vpop.f32.mrb[0].mxu0
        %v825 = vadd.f32 %v487, %v824
        %v826 = vpop.f32.mrb[0].mxu0
        %827 = vdwg.mxu0
        %828 = vmatprep.subr.bf16.mxu0 0
        %829 = vmatpush1.bf16.msra.mxu0 %v701
        %830 = vmatprep.subr.bf16.mxu0 0
        %831 = vmatpush1.bf16.msra.mxu0 %v702
        %832 = vmatprep.subr.bf16.mxu0 0
        %833 = vmatpush1.bf16.msra.mxu0 %v703
        %834 = vmatprep.subr.bf16.mxu0 0
        %835 = vmatpush1.bf16.msra.mxu0 %v704
        %836 = vmatprep.subr.bf16.mxu0 0
        %837 = vmatpush1.bf16.msra.mxu0 %v705
        %838 = vmatprep.subr.bf16.mxu0 0
        %839 = vmatpush1.bf16.msra.mxu0 %v706
        %840 = vmatprep.subr.bf16.mxu0 0
        %841 = vmatpush1.bf16.msra.mxu0 %v707
        %842 = vmatprep.subr.bf16.mxu0 0
        %843 = vmatpush1.bf16.msra.mxu0 %v708
        %844 = vmatprep.subr.bf16.mxu0 0
        %845 = vmatpush1.bf16.msra.mxu0 %v709
        %846 = vmatprep.subr.bf16.mxu0 0
        %847 = vmatpush1.bf16.msra.mxu0 %v710
        %848 = vmatprep.subr.bf16.mxu0 0
        %849 = vmatpush1.bf16.msra.mxu0 %v711
        %850 = vmatprep.subr.bf16.mxu0 0
        %851 = vmatpush1.bf16.msra.mxu0 %v712
        %852 = vmatprep.subr.bf16.mxu0 0
        %853 = vmatpush1.bf16.msra.mxu0 %v713
        %854 = vmatprep.subr.bf16.mxu0 0
        %855 = vmatpush1.bf16.msra.mxu0 %v714
        %856 = vmatprep.subr.bf16.mxu0 0
        %857 = vmatpush1.bf16.msra.mxu0 %v715
        %858 = vmatprep.subr.bf16.mxu0 0
        %859 = vmatpush1.bf16.msra.mxu0 %v716
        %860 = vmatprep.mubr.bf16.mxu0 %v380
        %861 = vmatmul.mubr.bf16.gmra.mrb[0].mxu0 %v379
        %v862 = vpop.f32.mrb[0].mxu0
        %v863 = vadd.f32 %v822, %v862
        %v864 = vpop.f32.mrb[0].mxu0
        %v865 = vpop.f32.mrb[0].mxu0
        %v866 = vadd.f32 %v825, %v865
        %v867 = vpop.f32.mrb[0].mxu0
        %868 = vdwg.mxu0
        %869 = vmatprep.subr.bf16.mxu0 0
        %870 = vmatpush1.bf16.msra.mxu0 %v717
        %871 = vmatprep.subr.bf16.mxu0 0
        %872 = vmatpush1.bf16.msra.mxu0 %v718
        %873 = vmatprep.subr.bf16.mxu0 0
        %874 = vmatpush1.bf16.msra.mxu0 %v719
        %875 = vmatprep.subr.bf16.mxu0 0
        %876 = vmatpush1.bf16.msra.mxu0 %v720
        %877 = vmatprep.subr.bf16.mxu0 0
        %878 = vmatpush1.bf16.msra.mxu0 %v721
        %879 = vmatprep.subr.bf16.mxu0 0
        %880 = vmatpush1.bf16.msra.mxu0 %v722
        %881 = vmatprep.subr.bf16.mxu0 0
        %882 = vmatpush1.bf16.msra.mxu0 %v723
        %883 = vmatprep.subr.bf16.mxu0 0
        %884 = vmatpush1.bf16.msra.mxu0 %v724
        %885 = vmatprep.subr.bf16.mxu0 0
        %886 = vmatpush1.bf16.msra.mxu0 %v725
        %887 = vmatprep.subr.bf16.mxu0 0
        %888 = vmatpush1.bf16.msra.mxu0 %v726
        %889 = vmatprep.subr.bf16.mxu0 0
        %890 = vmatpush1.bf16.msra.mxu0 %v727
        %891 = vmatprep.subr.bf16.mxu0 0
        %892 = vmatpush1.bf16.msra.mxu0 %v728
        %893 = vmatprep.subr.bf16.mxu0 0
        %894 = vmatpush1.bf16.msra.mxu0 %v729
        %895 = vmatprep.subr.bf16.mxu0 0
        %896 = vmatpush1.bf16.msra.mxu0 %v730
        %897 = vmatprep.subr.bf16.mxu0 0
        %898 = vmatpush1.bf16.msra.mxu0 %v731
        %899 = vmatprep.subr.bf16.mxu0 0
        %900 = vmatpush1.bf16.msra.mxu0 %v732
        %901 = vmatprep.mubr.bf16.mxu0 %v382
        %902 = vmatmul.mubr.bf16.gmra.mrb[0].mxu0 %v381
        %v903 = vpop.f32.mrb[0].mxu0
        %v904 = vadd.f32 %v863, %v903
        %v905 = vpop.f32.mrb[0].mxu0
        %v906 = vpop.f32.mrb[0].mxu0
        %v907 = vadd.f32 %v866, %v906
        %v908 = vpop.f32.mrb[0].mxu0
        %909 = vdwg.mxu0
        %910 = vmatprep.subr.bf16.mxu0 0
        %911 = vmatpush1.bf16.msra.mxu0 %v733
        %912 = vmatprep.subr.bf16.mxu0 0
        %913 = vmatpush1.bf16.msra.mxu0 0
        %914 = vmatprep.subr.bf16.mxu0 0
        %915 = vmatpush1.bf16.msra.mxu0 0
        %916 = vmatprep.subr.bf16.mxu0 0
        %917 = vmatpush1.bf16.msra.mxu0 0
        %918 = vmatprep.subr.bf16.mxu0 0
        %919 = vmatpush1.bf16.msra.mxu0 0
        %920 = vmatprep.subr.bf16.mxu0 0
        %921 = vmatpush1.bf16.msra.mxu0 0
        %922 = vmatprep.subr.bf16.mxu0 0
        %923 = vmatpush1.bf16.msra.mxu0 0
        %924 = vmatprep.subr.bf16.mxu0 0
        %925 = vmatpush1.bf16.msra.mxu0 0
        %926 = vmatprep.subr.bf16.mxu0 0
        %927 = vmatpush1.bf16.msra.mxu0 0
        %928 = vmatprep.subr.bf16.mxu0 0
        %929 = vmatpush1.bf16.msra.mxu0 0
        %930 = vmatprep.subr.bf16.mxu0 0
        %931 = vmatpush1.bf16.msra.mxu0 0
        %932 = vmatprep.subr.bf16.mxu0 0
        %933 = vmatpush1.bf16.msra.mxu0 0
        %934 = vmatprep.subr.bf16.mxu0 0
        %935 = vmatpush1.bf16.msra.mxu0 0
        %936 = vmatprep.subr.bf16.mxu0 0
        %937 = vmatpush1.bf16.msra.mxu0 0
        %938 = vmatprep.subr.bf16.mxu0 0
        %939 = vmatpush1.bf16.msra.mxu0 0
        %940 = vmatprep.subr.bf16.mxu0 0
        %941 = vmatpush1.bf16.msra.mxu0 0
        %942 = vmatprep.mubr.bf16.mxu0 0
        %943 = vmatmul.mubr.bf16.gmra.mrb[0].mxu0 %v785
        %v944 = vpop.f32.mrb[0].mxu0
        %v945 = vadd.f32 %v904, %v944
        %v946 = vpop.f32.mrb[0].mxu0
        %v947 = vpop.f32.mrb[0].mxu0
        %v948 = vadd.f32 %v907, %v947
        %v949 = vpop.f32.mrb[0].mxu0
        %950 = vdwg.mxu0
        %v951 = vmax.f32 %v945, 0.0
        %v952 = vmax.f32 %v948, 0.0
        %v953 = vpack.c.bf16 %v952, %v951
        %v954 = vld [vmem:[%s3] sm:$0xf]
        %v955 = vld [vmem:[%s3 + $0x4] sm:$0xf]
        %v956 = vld [vmem:[%s3 + $0x8] sm:$0xf]
        %v957 = vld [vmem:[%s3 + $0xc] sm:$0xf]
        %v958 = vld [vmem:[%s3 + $0x10] sm:$0xf]
        %v959 = vld [vmem:[%s3 + $0x14] sm:$0xf]
        %v960 = vld [vmem:[%s3 + $0x18] sm:$0xf]
        %v961 = vld [vmem:[%s3 + $0x1c] sm:$0xf]
        %v962 = vld [vmem:[%s4] sm:$0x1]
        %v964 = vlaneseq
        %v965 = vshrl.u32 %v964, 7
        %v966 = vsub.s32 0, %v965
        %v967 = vrot.slane %v962, %v966
        %v977 = vunpack.c.l.b16 %v954
        %v978 = vunpack.c.l.b16 %v955
        %v979 = vunpack.c.l.b16 %v956
        %v980 = vunpack.c.l.b16 %v957
        %v981 = vunpack.c.l.b16 %v958
        %v982 = vunpack.c.l.b16 %v959
        %v983 = vunpack.c.l.b16 %v960
        %v984 = vunpack.c.l.b16 %v961
        %v985 = vpack.c.b16 %v978, %v977
        %v986 = vpack.c.b16 %v980, %v979
        %v987 = vpack.c.b16 %v982, %v981
        %v988 = vpack.c.b16 %v984, %v983
        %vm993 = vcmask 523264
        %v995 = vsel %vm993, %v953, 0
        %997 = vmatprep.subr.bf16.mxu0 0
        %998 = vmatpush1.bf16.msra.mxu0 %v985
        %999 = vmatprep.subr.bf16.mxu0 0
        %1000 = vmatpush1.bf16.msra.mxu0 %v986
        %1001 = vmatprep.subr.bf16.mxu0 0
        %1002 = vmatpush1.bf16.msra.mxu0 %v987
        %1003 = vmatprep.subr.bf16.mxu0 0
        %1004 = vmatpush1.bf16.msra.mxu0 %v988
        %1005 = vmatprep.subr.bf16.mxu0 0
        %1006 = vmatpush1.bf16.msra.mxu0 0
        %1007 = vmatprep.subr.bf16.mxu0 0
        %1008 = vmatpush1.bf16.msra.mxu0 0
        %1009 = vmatprep.subr.bf16.mxu0 0
        %1010 = vmatpush1.bf16.msra.mxu0 0
        %1011 = vmatprep.subr.bf16.mxu0 0
        %1012 = vmatpush1.bf16.msra.mxu0 0
        %1013 = vmatprep.subr.bf16.mxu0 0
        %1014 = vmatpush1.bf16.msra.mxu0 0
        %1015 = vmatprep.subr.bf16.mxu0 0
        %1016 = vmatpush1.bf16.msra.mxu0 0
        %1017 = vmatprep.subr.bf16.mxu0 0
        %1018 = vmatpush1.bf16.msra.mxu0 0
        %1019 = vmatprep.subr.bf16.mxu0 0
        %1020 = vmatpush1.bf16.msra.mxu0 0
        %1021 = vmatprep.subr.bf16.mxu0 0
        %1022 = vmatpush1.bf16.msra.mxu0 0
        %1023 = vmatprep.subr.bf16.mxu0 0
        %1024 = vmatpush1.bf16.msra.mxu0 0
        %1025 = vmatprep.subr.bf16.mxu0 0
        %1026 = vmatpush1.bf16.msra.mxu0 0
        %1027 = vmatprep.subr.bf16.mxu0 0
        %1028 = vmatpush1.bf16.msra.mxu0 0
        %1029 = vmatprep.mubr.bf16.mxu0 0
        %1030 = vmatmul.mubr.bf16.gmra.mrb[0].mxu0 %v995
        %v1031 = vpop.f32.mrb[0].mxu0
        %v1032 = vadd.f32 %v967, %v1031
        %v1033 = vpop.f32.mrb[0].mxu0
        %v1034 = vpop.f32.mrb[0].mxu0
        %v1035 = vadd.f32 %v967, %v1034
        %v1036 = vpop.f32.mrb[0].mxu0
        %1037 = vdwg.mxu0
        %v1038 = vmax.f32 %v1032, 0.0
        %v1039 = vmax.f32 %v1035, 0.0
        %v1040 = vpack.c.bf16 %v1039, %v1038
        %v1041 = vld [vmem:[%s5] sm:$0xf]
        %v1042 = vld [vmem:[%s5 + $0x4] sm:$0xf]
        %v1043 = vld [vmem:[%s5 + $0x8] sm:$0xf]
        %v1044 = vld [vmem:[%s5 + $0xc] sm:$0xf]
        %v1045 = vld [vmem:[%s5 + $0x10] sm:$0xf]
        %v1046 = vld [vmem:[%s5 + $0x14] sm:$0xf]
        %v1047 = vld [vmem:[%s5 + $0x18] sm:$0xf]
        %v1048 = vld [vmem:[%s5 + $0x1c] sm:$0xf]
        %v1049 = vld [vmem:[%s6] sm:$0x1]
        %v1051 = vlaneseq
        %v1052 = vshrl.u32 %v1051, 7
        %v1053 = vsub.s32 0, %v1052
        %v1054 = vrot.slane %v1049, %v1053
        %v1064 = vunpack.c.l.b16 %v1041
        %v1065 = vunpack.c.l.b16 %v1042
        %v1066 = vunpack.c.l.b16 %v1043
        %v1067 = vunpack.c.l.b16 %v1044
        %v1068 = vunpack.c.l.b16 %v1045
        %v1069 = vunpack.c.l.b16 %v1046
        %v1070 = vunpack.c.l.b16 %v1047
        %v1071 = vunpack.c.l.b16 %v1048
        %v1072 = vpack.c.b16 %v1065, %v1064
        %v1073 = vpack.c.b16 %v1067, %v1066
        %v1074 = vpack.c.b16 %v1069, %v1068
        %v1075 = vpack.c.b16 %v1071, %v1070
        %v1081 = vsel %vm993, %v1040, 0
        %1083 = vmatprep.subr.bf16.mxu0 0
        %1084 = vmatpush1.bf16.msra.mxu0 %v1072
        %1085 = vmatprep.subr.bf16.mxu0 0
        %1086 = vmatpush1.bf16.msra.mxu0 %v1073
        %1087 = vmatprep.subr.bf16.mxu0 0
        %1088 = vmatpush1.bf16.msra.mxu0 %v1074
        %1089 = vmatprep.subr.bf16.mxu0 0
        %1090 = vmatpush1.bf16.msra.mxu0 %v1075
        %1091 = vmatprep.subr.bf16.mxu0 0
        %1092 = vmatpush1.bf16.msra.mxu0 0
        %1093 = vmatprep.subr.bf16.mxu0 0
        %1094 = vmatpush1.bf16.msra.mxu0 0
        %1095 = vmatprep.subr.bf16.mxu0 0
        %1096 = vmatpush1.bf16.msra.mxu0 0
        %1097 = vmatprep.subr.bf16.mxu0 0
        %1098 = vmatpush1.bf16.msra.mxu0 0
        %1099 = vmatprep.subr.bf16.mxu0 0
        %1100 = vmatpush1.bf16.msra.mxu0 0
        %1101 = vmatprep.subr.bf16.mxu0 0
        %1102 = vmatpush1.bf16.msra.mxu0 0
        %1103 = vmatprep.subr.bf16.mxu0 0
        %1104 = vmatpush1.bf16.msra.mxu0 0
        %1105 = vmatprep.subr.bf16.mxu0 0
        %1106 = vmatpush1.bf16.msra.mxu0 0
        %1107 = vmatprep.subr.bf16.mxu0 0
        %1108 = vmatpush1.bf16.msra.mxu0 0
        %1109 = vmatprep.subr.bf16.mxu0 0
        %1110 = vmatpush1.bf16.msra.mxu0 0
        %1111 = vmatprep.subr.bf16.mxu0 0
        %1112 = vmatpush1.bf16.msra.mxu0 0
        %1113 = vmatprep.subr.bf16.mxu0 0
        %1114 = vmatpush1.bf16.msra.mxu0 0
        %1115 = vmatprep.mubr.bf16.mxu0 0
        %1116 = vmatmul.mubr.bf16.gmra.mrb[0].mxu0 %v1081
        %v1117 = vpop.f32.mrb[0].mxu0
        %v1118 = vadd.f32 %v1054, %v1117
        %v1119 = vpop.f32.mrb[0].mxu0
        %v1120 = vpop.f32.mrb[0].mxu0
        %v1121 = vadd.f32 %v1054, %v1120
        %v1122 = vpop.f32.mrb[0].mxu0
        %1123 = vdwg.mxu0
        %v1124 = vmax.f32 %v1118, 0.0
        %v1125 = vmax.f32 %v1121, 0.0
        %v1126 = vpack.c.bf16 %v1125, %v1124
        %v1127 = vld [vmem:[%s7] sm:$0xf]
        %v1128 = vld [vmem:[%s7 + $0x4] sm:$0xf]
        %v1129 = vld [vmem:[%s7 + $0x8] sm:$0xf]
        %v1130 = vld [vmem:[%s7 + $0xc] sm:$0xf]
        %v1131 = vld [vmem:[%s7 + $0x10] sm:$0xf]
        %v1132 = vld [vmem:[%s7 + $0x14] sm:$0xf]
        %v1133 = vld [vmem:[%s7 + $0x18] sm:$0xf]
        %v1134 = vld [vmem:[%s7 + $0x1c] sm:$0xf]
        %v1135 = vld [vmem:[%s8] sm:$0x1]
        %v1137 = vlaneseq
        %v1138 = vshrl.u32 %v1137, 7
        %v1139 = vsub.s32 0, %v1138
        %v1140 = vrot.slane %v1135, %v1139
        %v1150 = vunpack.c.l.b16 %v1127
        %v1151 = vunpack.c.l.b16 %v1128
        %v1152 = vunpack.c.l.b16 %v1129
        %v1153 = vunpack.c.l.b16 %v1130
        %v1154 = vunpack.c.l.b16 %v1131
        %v1155 = vunpack.c.l.b16 %v1132
        %v1156 = vunpack.c.l.b16 %v1133
        %v1157 = vunpack.c.l.b16 %v1134
        %v1158 = vpack.c.b16 %v1151, %v1150
        %v1159 = vpack.c.b16 %v1153, %v1152
        %v1160 = vpack.c.b16 %v1155, %v1154
        %v1161 = vpack.c.b16 %v1157, %v1156
        %v1167 = vsel %vm993, %v1126, 0
        %1169 = vmatprep.subr.bf16.mxu0 0
        %1170 = vmatpush1.bf16.msra.mxu0 %v1158
        %1171 = vmatprep.subr.bf16.mxu0 0
        %1172 = vmatpush1.bf16.msra.mxu0 %v1159
        %1173 = vmatprep.subr.bf16.mxu0 0
        %1174 = vmatpush1.bf16.msra.mxu0 %v1160
        %1175 = vmatprep.subr.bf16.mxu0 0
        %1176 = vmatpush1.bf16.msra.mxu0 %v1161
        %1177 = vmatprep.subr.bf16.mxu0 0
        %1178 = vmatpush1.bf16.msra.mxu0 0
        %1179 = vmatprep.subr.bf16.mxu0 0
        %1180 = vmatpush1.bf16.msra.mxu0 0
        %1181 = vmatprep.subr.bf16.mxu0 0
        %1182 = vmatpush1.bf16.msra.mxu0 0
        %1183 = vmatprep.subr.bf16.mxu0 0
        %1184 = vmatpush1.bf16.msra.mxu0 0
        %1185 = vmatprep.subr.bf16.mxu0 0
        %1186 = vmatpush1.bf16.msra.mxu0 0
        %1187 = vmatprep.subr.bf16.mxu0 0
        %1188 = vmatpush1.bf16.msra.mxu0 0
        %1189 = vmatprep.subr.bf16.mxu0 0
        %1190 = vmatpush1.bf16.msra.mxu0 0
        %1191 = vmatprep.subr.bf16.mxu0 0
        %1192 = vmatpush1.bf16.msra.mxu0 0
        %1193 = vmatprep.subr.bf16.mxu0 0
        %1194 = vmatpush1.bf16.msra.mxu0 0
        %1195 = vmatprep.subr.bf16.mxu0 0
        %1196 = vmatpush1.bf16.msra.mxu0 0
        %1197 = vmatprep.subr.bf16.mxu0 0
        %1198 = vmatpush1.bf16.msra.mxu0 0
        %1199 = vmatprep.subr.bf16.mxu0 0
        %1200 = vmatpush1.bf16.msra.mxu0 0
        %1201 = vmatprep.mubr.bf16.mxu0 0
        %1202 = vmatmul.mubr.bf16.gmra.mrb[0].mxu0 %v1167
        %v1203 = vpop.f32.mrb[0].mxu0
        %v1204 = vadd.f32 %v1140, %v1203
        %v1205 = vpop.f32.mrb[0].mxu0
        %v1206 = vpop.f32.mrb[0].mxu0
        %v1207 = vadd.f32 %v1140, %v1206
        %v1208 = vpop.f32.mrb[0].mxu0
        %1209 = vdwg.mxu0
        %vm1210 = vcmask 80896
        %v1211 = vsel %vm1210, %v1204, -inf
        %1212 = vmax.xlane.f32.xlu0 %v1211
        %v1213 = vpop.xlane.xlu0 %1212
        %v1214 = vsel %vm1210, %v1207, -inf
        %1215 = vmax.xlane.f32.xlu0 %v1214
        %v1216 = vpop.xlane.xlu0 %1215
        %v1217 = vsub.f32 %v1204, %v1213
        %v1218 = vsub.f32 %v1207, %v1216
        %v1219 = vmul.f32 %v1217, 1.442695
        %v1220 = vpow.pop %v1219
        %v1221 = vmul.f32 %v1218, 1.442695
        %v1222 = vpow.pop %v1221
        %v1223 = vsel %vm1210, %v1220, 0.0
        %1224 = vadd.xlane.f32.xlu0 %v1223
        %v1225 = vpop.xlane.xlu0 %1224
        %v1226 = vsel %vm1210, %v1222, 0.0
        %1227 = vadd.xlane.f32.xlu0 %v1226
        %v1228 = vpop.xlane.xlu0 %1227
        %v1229 = vlog2.pop %v1225
        %v1230 = vmul.f32 %v1229, 0.6931472
        %v1231 = vlog2.pop %v1228
        %v1232 = vmul.f32 %v1231, 0.6931472
        %v1233 = vsub.f32 %v1217, %v1230
        %v1234 = vsub.f32 %v1218, %v1232
        %1235 = vst.msk [vmem:[%s339] sm:$0xff] %vm1210, %v1233
        %1236 = vst.msk [vmem:[%s339 + $0x8] sm:$0xff] %vm1210, %v1234
        %s1237 = sand.u32 %s222, 1
        %s1238 = sand.u32 %s222, 1
        %s1239 = smul.addr %s1238, 16
        %s1240 = scalar_lea.vmem [#allocation2], %s1239
        // Predicated region
        $region57: #{tpu_custom_call.1} parent=55 // pred_check
          %p1241 = pneg %p232
        $region58: #{tpu_custom_call.1} parent=55 // pred_check_branch
          %1243 = sbr.rel (%p1241) target = $region60
        $region59: #{tpu_custom_call.1} parent=55 // pred_region
          %s1244 = smul.u32 2, %s20
          %s1245 = ssub.s32 3, %s1244
          %p1246 = scmp.lt.s32.totalorder %s1245, 2
          %s1247 = scalar_select %p1246, %s1245, 2
          %s1248 = smul.u32 128, %s1247
          %p1249 = scmp.ne.s32.totalorder 0, %s1248
          %s1250 = smul.addr %s1244, 8
          %s1251 = scalar_lea.vmem %s9, %s1250
          // Predicated region
          $region61: #{tpu_custom_call.1} parent=59 // pred_check
            %p1252 = pneg %p1249
          $region62: #{tpu_custom_call.1} parent=59 // pred_check_branch
            %1254 = sbr.rel (%p1252) target = $region64
          $region63: #{tpu_custom_call.1} parent=59 // pred_region
            // Predicated region
            $region65: #{tpu_custom_call.1} parent=63 // pred_check
              _
            $region66: #{tpu_custom_call.1} parent=63 // pred_check_branch
              %1256 = sbr.rel (0) target = $region68
            $region67: #{tpu_custom_call.1} parent=63 // pred_region
              // Predicated region
              $region87: #{tpu_custom_call.1} parent=67 // pred_check
                _
              $region88: #{tpu_custom_call.1} parent=67 // pred_check_branch
                %1307 = sbr.rel (0) target = $region90
              $region89: #{tpu_custom_call.1} parent=67 // pred_region
                %s1308 = sshrl.u32 %s1247, 1
                // While loop
                $region91: #{tpu_custom_call.1} parent=89 // loop_pre_header
                  _
                $region92: #{tpu_custom_call.1} parent=89 // loop_header
                  %s1310 = sphi 0, %s1312
                  %p1311 = scmp.ge.s32.totalorder %s1310, %s1308
                  %s1315 = sphi 0, %s1324
                  %s1316 = sphi %s1240, %s1327
                  %s1317 = sphi %s1251, %s1328
                $region93: #{tpu_custom_call.1} parent=89 // loop_header_branch
                  %1314 = sbr.rel (%p1311) target = $region97
                $region94: #{tpu_custom_call.1} parent=89 // loop_body
                  %v1318 = vld [vmem:[%s1316] sm:$0xff]
                  %1319 = vst [vmem:[%s1317] sm:$0xff] %v1318
                  %v1320 = vld [vmem:[%s1316 + $0x8] sm:$0xff]
                  %1321 = vst [vmem:[%s1317 + $0x8] sm:$0xff] %v1320
                  %s1322 = sadd.s32 1, %s1315
                  %p1323 = scmp.ge.s32.totalorder %s1322, %s1308
                  %s1324 = scalar_select %p1323, 0, %s1322
                  %s1325 = smul.u32 %s1324, 16
                  %s1326 = smul.u32 %s1324, 16
                  %s1327 = scalar_lea.vmem %s1240, %s1325 [#allocation2]
                  %s1328 = scalar_lea.vmem %s1251, %s1326
                $region95: #{tpu_custom_call.1} parent=89 // loop_footer
                  %s1312 = sadd.s32 %s1310, 1
                $region96: #{tpu_custom_call.1} parent=89 // loop_footer_branch
                  %1309 = sbr.rel target = $region92
                $region97: #{tpu_custom_call.1} parent=89 // loop_exit
                  _
                %s1329 = sshrl.u32 %s1247, 1
                %s1330 = sand.u32 %s1247, 1
                %s1331 = smul.u32 %s1329, 2
                %s1332 = smul.u32 8, %s1331
                %s1333 = scalar_lea.vmem %s1240, %s1332 [#allocation2]
                %s1334 = smul.u32 8, %s1331
                %s1335 = scalar_lea.vmem %s1251, %s1334
                // While loop
                $region98: #{tpu_custom_call.1} parent=89 // loop_pre_header
                  _
                $region99: #{tpu_custom_call.1} parent=89 // loop_header
                  %s1337 = sphi 0, %s1339
                  %p1338 = scmp.ge.s32.totalorder %s1337, %s1330
                  %s1342 = sphi 0, %s1349
                  %s1343 = sphi %s1333, %s1352
                  %s1344 = sphi %s1335, %s1353
                $region100: #{tpu_custom_call.1} parent=89 // loop_header_branch
                  %1341 = sbr.rel (%p1338) target = $region104
                $region101: #{tpu_custom_call.1} parent=89 // loop_body
                  %v1345 = vld [vmem:[%s1343] sm:$0xff]
                  %1346 = vst [vmem:[%s1344] sm:$0xff] %v1345
                  %s1347 = sadd.s32 1, %s1342
                  %p1348 = scmp.ge.s32.totalorder %s1347, %s1330
                  %s1349 = scalar_select %p1348, 0, %s1347
                  %s1350 = smul.u32 %s1349, 8
                  %s1351 = smul.u32 %s1349, 8
                  %s1352 = scalar_lea.vmem %s1333, %s1350 [#allocation2]
                  %s1353 = scalar_lea.vmem %s1335, %s1351
                $region102: #{tpu_custom_call.1} parent=89 // loop_footer
                  %s1339 = sadd.s32 %s1337, 1
                $region103: #{tpu_custom_call.1} parent=89 // loop_footer_branch
                  %1336 = sbr.rel target = $region99
                $region104: #{tpu_custom_call.1} parent=89 // loop_exit
                  _
              $region90: #{tpu_custom_call.1} parent=67 // pred_fallthru
                _
              // Predicated region
              $region105: #{tpu_custom_call.1} parent=67 // pred_check
                _
              $region106: #{tpu_custom_call.1} parent=67 // pred_check_branch
                %1355 = sbr.rel target = $region108
              $region107: #{tpu_custom_call.1} parent=67 // pred_region
                _
              $region108: #{tpu_custom_call.1} parent=67 // pred_fallthru
                _
            $region68: #{tpu_custom_call.1} parent=63 // pred_fallthru
              _
            // Predicated region
            $region69: #{tpu_custom_call.1} parent=63 // pred_check
              _
            $region70: #{tpu_custom_call.1} parent=63 // pred_check_branch
              %1258 = sbr.rel target = $region72
            $region71: #{tpu_custom_call.1} parent=63 // pred_region
              %s1260 = sshrl.u32 %s1247, 1
              // While loop
              $region73: #{tpu_custom_call.1} parent=71 // loop_pre_header
                _
              $region74: #{tpu_custom_call.1} parent=71 // loop_header
                %s1262 = sphi 0, %s1264
                %p1263 = scmp.ge.s32.totalorder %s1262, %s1260
                %s1267 = sphi 0, %s1276
                %s1268 = sphi %s1240, %s1279
                %s1269 = sphi %s1251, %s1280
              $region75: #{tpu_custom_call.1} parent=71 // loop_header_branch
                %1266 = sbr.rel (%p1263) target = $region79
              $region76: #{tpu_custom_call.1} parent=71 // loop_body
                %v1270 = vld [vmem:[%s1268] sm:$0xff]
                %1271 = vst [vmem:[%s1269] sm:$0xff] %v1270
                %v1272 = vld [vmem:[%s1268 + $0x8] sm:$0xff]
                %1273 = vst [vmem:[%s1269 + $0x8] sm:$0xff] %v1272
                %s1274 = sadd.s32 1, %s1267
                %p1275 = scmp.ge.s32.totalorder %s1274, %s1260
                %s1276 = scalar_select %p1275, 0, %s1274
                %s1277 = smul.u32 %s1276, 16
                %s1278 = smul.u32 %s1276, 16
                %s1279 = scalar_lea.vmem %s1240, %s1277 [#allocation2]
                %s1280 = scalar_lea.vmem %s1251, %s1278
              $region77: #{tpu_custom_call.1} parent=71 // loop_footer
                %s1264 = sadd.s32 %s1262, 1
              $region78: #{tpu_custom_call.1} parent=71 // loop_footer_branch
                %1261 = sbr.rel target = $region74
              $region79: #{tpu_custom_call.1} parent=71 // loop_exit
                _
              %s1281 = sshrl.u32 %s1247, 1
              %s1282 = sand.u32 %s1247, 1
              %s1283 = smul.u32 %s1281, 2
              %s1284 = smul.u32 8, %s1283
              %s1285 = scalar_lea.vmem %s1240, %s1284 [#allocation2]
              %s1286 = smul.u32 8, %s1283
              %s1287 = scalar_lea.vmem %s1251, %s1286
              // While loop
              $region80: #{tpu_custom_call.1} parent=71 // loop_pre_header
                _
              $region81: #{tpu_custom_call.1} parent=71 // loop_header
                %s1289 = sphi 0, %s1291
                %p1290 = scmp.ge.s32.totalorder %s1289, %s1282
                %s1294 = sphi 0, %s1301
                %s1295 = sphi %s1285, %s1304
                %s1296 = sphi %s1287, %s1305
              $region82: #{tpu_custom_call.1} parent=71 // loop_header_branch
                %1293 = sbr.rel (%p1290) target = $region86
              $region83: #{tpu_custom_call.1} parent=71 // loop_body
                %v1297 = vld [vmem:[%s1295] sm:$0xff]
                %1298 = vst [vmem:[%s1296] sm:$0xff] %v1297
                %s1299 = sadd.s32 1, %s1294
                %p1300 = scmp.ge.s32.totalorder %s1299, %s1282
                %s1301 = scalar_select %p1300, 0, %s1299
                %s1302 = smul.u32 %s1301, 8
                %s1303 = smul.u32 %s1301, 8
                %s1304 = scalar_lea.vmem %s1285, %s1302 [#allocation2]
                %s1305 = scalar_lea.vmem %s1287, %s1303
              $region84: #{tpu_custom_call.1} parent=71 // loop_footer
                %s1291 = sadd.s32 %s1289, 1
              $region85: #{tpu_custom_call.1} parent=71 // loop_footer_branch
                %1288 = sbr.rel target = $region81
              $region86: #{tpu_custom_call.1} parent=71 // loop_exit
                _
            $region72: #{tpu_custom_call.1} parent=63 // pred_fallthru
              _
          $region64: #{tpu_custom_call.1} parent=59 // pred_fallthru
            _
          %1356 = vnop
        $region60: #{tpu_custom_call.1} parent=55 // pred_fallthru
          _
      $region56: #{tpu_custom_call.1} parent=5 // pred_fallthru
        _
      %p1357 = scmp.le.s32.totalorder 2, %s15
      // Predicated region
      $region109: #{tpu_custom_call.1} parent=5 // pred_check
        %p1358 = pneg %p1357
      $region110: #{tpu_custom_call.1} parent=5 // pred_check_branch
        %1360 = sbr.rel (%p1358) target = $region112
      $region111: #{tpu_custom_call.1} parent=5 // pred_region
        %s1361 = ssub.s32 %s15, 2
        // Predicated region
        $region113: #{tpu_custom_call.1} parent=111 // pred_check
          %p1362 = pneg %p238
        $region114: #{tpu_custom_call.1} parent=111 // pred_check_branch
          %1364 = sbr.rel (%p1362) target = $region116
        $region115: #{tpu_custom_call.1} parent=111 // pred_region
          %s1365 = sand.u32 %s223, 1
          %s1366 = sand.u32 %s223, 1
          %s1367 = smul.addr %s1366, 16
          %s1368 = scalar_lea.vmem [#allocation2], %s1367
        $region116: #{tpu_custom_call.1} parent=111 // pred_fallthru
          _
      $region112: #{tpu_custom_call.1} parent=5 // pred_fallthru
        _
    $region6: #{tpu_custom_call.1} parent=1 // loop_footer
      %s19 = sadd.s32 1, %s15
    $region7: #{tpu_custom_call.1} parent=1 // loop_footer_branch
      %14 = sbr.rel target = $region3
    $region8: #{tpu_custom_call.1} parent=1 // loop_exit
      _

</llo_original>
